<compile_context>
chip_gen: v6e
topology: v6e:2x2x1
jax: 0.10.0
libtpu: 0.0.40
codegen_flags: <defaults>
</compile_context>

<pallas_src>
import jax
import jax.numpy as jnp
from jax.experimental import pallas as pl
from jax.experimental.pallas import tpu as pltpu


def _round_up(x, m):
    return ((x + m - 1) // m) * m


# --------------------------------------------------------------------------- #
# Kernel
# --------------------------------------------------------------------------- #
def gru_seq_kernel(tok_ref, gi_ref, h0_ref, whh_ref, bhhn_ref, out_ref, h_scr):
    # tok_ref: (T,) int32 scalar-prefetched in SMEM; only consumed by the
    # index_maps (embedding-row gather), not read in the body.
    del tok_ref
    t = pl.program_id(0)
    Hp = h_scr.shape[-1]

    @pl.when(t == 0)
    def _init():
        h_scr[...] = h0_ref[...]

    gi = gi_ref[0]                                    # (1, 3*Hp): x@W_ih + biases, pre-folded
    h = h_scr[...]                                    # (1, Hp)   recurrent state (f32)
    gh = jnp.dot(h, whh_ref[...],                     # (1, 3*Hp) fused hidden-path matmul
                 preferred_element_type=jnp.float32)

    # Gate order (r, z, n); each gate occupies one 128-lane block.
    r = jax.nn.sigmoid(gi[:, 0:Hp] + gh[:, 0:Hp])
    z = jax.nn.sigmoid(gi[:, Hp:2 * Hp] + gh[:, Hp:2 * Hp])
    n = jnp.tanh(gi[:, 2 * Hp:3 * Hp] + r * (gh[:, 2 * Hp:3 * Hp] + bhhn_ref[...]))
    h_new = (1.0 - z) * n + z * h                     # PyTorch GRU update

    h_scr[...] = h_new                                # carry hidden in VMEM
    out_ref[0] = h_new                                # per-step output (== hidden)


# --------------------------------------------------------------------------- #
# Parameter fusion / padding (one-time setup, plain JAX)
# --------------------------------------------------------------------------- #
def prepare_encoder_params(params, lane=128):
    """Fuse/pad raw (emb, w_ih, w_hh, b_ih, b_hh) params for the kernel.

    Raw layout (gate order r, z, n):
      emb: (V, H);  w_ih, w_hh: (3, H, H) pre-transposed so x @ w[g] == W[g] @ x;
      b_ih, b_hh: (3, 1, H).
    """
    emb, wih, whh, bih, bhh = params
    V, H = emb.shape
    Hp = _round_up(H, lane)
    hi = jax.lax.Precision.HIGHEST

    # Input projection table: x is a one-hot row-select, so x @ W_ih is a lookup.
    gi = jnp.einsum('vh,ghk->vgk', emb, wih, precision=hi) + bih[:, 0][None]   # (V,3,H)
    # b_hh folds into the r/z gates (added before the nonlinearity); the n-gate
    # b_hh must stay separate because it is multiplied by r in the GRU.
    gi = gi + jnp.stack([bhh[0, 0], bhh[1, 0], jnp.zeros((H,), jnp.float32)])[None]
    emb_proj = jnp.zeros((V, 3, Hp), jnp.float32).at[:, :, :H].set(gi)
    emb_proj = emb_proj.reshape(V, 1, 3 * Hp)

    # Hidden-path weights, gate-concatenated along lanes, zero-padded to (Hp, 3*Hp).
    whh_flat = jnp.zeros((Hp, 3 * Hp), jnp.float32)
    for g in range(3):
        whh_flat = whh_flat.at[:H, g * Hp:g * Hp + H].set(whh[g])

    bhh_n = jnp.zeros((1, Hp), jnp.float32).at[0, :H].set(bhh[2, 0])
    return emb_proj, whh_flat, bhh_n, H, Hp


# --------------------------------------------------------------------------- #
# Forward wrapper
# --------------------------------------------------------------------------- #
def encoder_rnn_forward(tokens, hidden, fused):
    """tokens: int32 (T,); hidden: f32 (1, 1, H).

    Returns (output (T, 1, H), hidden (1, 1, H)).  For T == 1 this is exactly
    EncoderRNN.forward(input, hidden); for T > 1 it is that forward applied
    sequentially over the tokens inside a single pallas_call.
    """
    emb_proj, whh_flat, bhh_n, H, Hp = fused
    T = int(tokens.shape[0])

    h0 = jnp.zeros((1, Hp), jnp.float32).at[0, :H].set(hidden.reshape(H))

    grid_spec = pltpu.PrefetchScalarGridSpec(
        num_scalar_prefetch=1,
        grid=(T,),
        in_specs=[
            # Only the selected embedding-projection row is fetched each step.
            pl.BlockSpec((1, 1, 3 * Hp), lambda t, tok: (tok[t], 0, 0)),
            pl.BlockSpec((1, Hp), lambda t, tok: (0, 0)),         # h0 (resident)
            pl.BlockSpec((Hp, 3 * Hp), lambda t, tok: (0, 0)),    # fused W_hh (resident)
            pl.BlockSpec((1, Hp), lambda t, tok: (0, 0)),         # b_hh of the n gate
        ],
        out_specs=pl.BlockSpec((1, 1, Hp), lambda t, tok: (t, 0, 0)),
        scratch_shapes=[pltpu.VMEM((1, Hp), jnp.float32)],        # recurrent hidden
    )

    out = pl.pallas_call(
        gru_seq_kernel,
        out_shape=jax.ShapeDtypeStruct((T, 1, Hp), jnp.float32),
        grid_spec=grid_spec,
        compiler_params=pltpu.CompilerParams(
            dimension_semantics=("arbitrary",),   # recurrence: grid is sequential
        ),
    )(tokens.astype(jnp.int32), emb_proj, h0, whh_flat, bhh_n)

    output = out[:, :, :H]                        # strip lane padding -> (T, 1, H)
    hidden_new = output[-1].reshape(1, 1, H)
    return output, hidden_new


# --------------------------------------------------------------------------- #
# Pure-JAX reference (PyTorch GRU semantics, stepped over the sequence)
# --------------------------------------------------------------------------- #
def ref_forward(tokens, hidden, params):
    emb, wih, whh, bih, bhh = params
    H = emb.shape[1]
    hi = jax.lax.Precision.HIGHEST
    h = hidden.reshape(1, H)
    outs = []
    for tok in list(tokens):
        x = emb[tok][None, :]
        gi = [jnp.dot(x, wih[g], precision=hi) + bih[g] for g in range(3)]
        gh = [jnp.dot(h, whh[g], precision=hi) + bhh[g] for g in range(3)]
        r = jax.nn.sigmoid(gi[0] + gh[0])
        z = jax.nn.sigmoid(gi[1] + gh[1])
        n = jnp.tanh(gi[2] + r * gh[2])
        h = (1.0 - z) * n + z * h
        outs.append(h)
    return jnp.stack(outs), h.reshape(1, 1, H)


def init_params(key, vocab_size, hidden_size):
    """Deterministic synthetic params mirroring nn.Embedding + nn.GRU shapes."""
    k_emb, k_wih, k_whh, k_bih, k_bhh = jax.random.split(key, 5)
    H = hidden_size
    bound = 1.0 / jnp.sqrt(jnp.float32(H))
    emb = jax.random.normal(k_emb, (vocab_size, H), dtype=jnp.float32)
    wih = jax.random.uniform(k_wih, (3, H, H), jnp.float32, -bound, bound)
    whh = jax.random.uniform(k_whh, (3, H, H), jnp.float32, -bound, bound)
    bih = jax.random.uniform(k_bih, (3, 1, H), jnp.float32, -bound, bound)
    bhh = jax.random.uniform(k_bhh, (3, 1, H), jnp.float32, -bound, bound)
    return emb, wih, whh, bih, bhh


if __name__ == "__main__":
    VOCAB = 16
    HIDDEN = 32
    SEQ = 8

    key = jax.random.PRNGKey(0)
    k_params, k_tok, k_hid = jax.random.split(key, 3)

    params = init_params(k_params, VOCAB, HIDDEN)
    fused = prepare_encoder_params(params)

    tokens = jax.random.randint(k_tok, (SEQ,), 0, VOCAB, dtype=jnp.int32)
    # initHidden() gives zeros; use a random hidden to exercise the h-path too.
    hidden0 = jax.random.normal(k_hid, (1, 1, HIDDEN), dtype=jnp.float32)

    # 1) Single-step call: exactly EncoderRNN.forward(input, hidden).
    out1, h1 = encoder_rnn_forward(tokens[:1], hidden0, fused)
    out1 = jax.block_until_ready(out1)
    h1 = jax.block_until_ready(h1)
    ref_out1, ref_h1 = ref_forward(tokens[:1], hidden0, params)
    assert out1.shape == (1, 1, HIDDEN) and h1.shape == (1, 1, HIDDEN)
    assert jnp.allclose(out1, ref_out1, atol=2e-4, rtol=2e-4)
    assert jnp.allclose(h1, ref_h1, atol=2e-4, rtol=2e-4)

    # 2) Full-sequence call: one pallas_call, hidden carried in VMEM across the grid.
    out, h_fin = encoder_rnn_forward(tokens, hidden0, fused)
    out = jax.block_until_ready(out)
    h_fin = jax.block_until_ready(h_fin)
    ref_out, ref_h = ref_forward(tokens, hidden0, params)
    assert out.shape == (SEQ, 1, HIDDEN) and h_fin.shape == (1, 1, HIDDEN)
    assert jnp.allclose(out, ref_out, atol=2e-4, rtol=2e-4)
    assert jnp.allclose(h_fin, ref_h, atol=2e-4, rtol=2e-4)

    print("KERNEL_OK")
</pallas_src>

<mosaic_0001>
module attributes {stable_mosaic.version = 11 : i64} {
  func.func @gru_seq_kernel(%arg0: i32, %arg1: memref<1xi32, #tpu.memory_space<smem>>, %arg2: memref<1x1x384xf32, #tpu.memory_space<vmem>>, %arg3: memref<1x128xf32, #tpu.memory_space<vmem>>, %arg4: memref<128x384xf32, #tpu.memory_space<vmem>>, %arg5: memref<1x128xf32, #tpu.memory_space<vmem>>, %arg6: memref<1x1x128xf32, #tpu.memory_space<vmem>>, %arg7: memref<1x128xf32, #tpu.memory_space<vmem>>) attributes {dimension_semantics = [#tpu.dimension_semantics<arbitrary>], iteration_bounds = array<i64: 1>, scalar_prefetch = 1 : i64, scratch_operands = 1 : i64, tpu.core_type = #tpu.core_type<tc>, window_params = [{transform_indices = @transform_0, window_bounds = array<i64: 1, 1, 384>}, {pipeline_mode = #tpu.pipeline_mode<synchronous>, transform_indices = @transform_1, window_bounds = array<i64: 1, 128>}, {pipeline_mode = #tpu.pipeline_mode<synchronous>, transform_indices = @transform_2, window_bounds = array<i64: 128, 384>}, {pipeline_mode = #tpu.pipeline_mode<synchronous>, transform_indices = @transform_3, window_bounds = array<i64: 1, 128>}, {transform_indices = @transform_4, window_bounds = array<i64: 1, 1, 128>}]} {
    %c0_i32 = arith.constant 0 : i32
    %0 = arith.cmpi eq, %arg0, %c0_i32 : i32
    %1 = arith.extui %0 : i1 to i32
    %c0_i32_0 = arith.constant 0 : i32
    %2 = arith.cmpi ne, %1, %c0_i32_0 : i32
    scf.if %2 {
      %c0_17 = arith.constant 0 : index
      %c0_18 = arith.constant 0 : index
      %40 = vector.load %arg3[%c0_17, %c0_18] : memref<1x128xf32, #tpu.memory_space<vmem>>, vector<1x128xf32>
      %c0_19 = arith.constant 0 : index
      %c0_20 = arith.constant 0 : index
      %41 = vector.load %arg7[%c0_19, %c0_20] : memref<1x128xf32, #tpu.memory_space<vmem>>, vector<1x128xf32>
      tpu.vector_store %arg7[%c0_19, %c0_20], %40 {strides = array<i32>} : memref<1x128xf32, #tpu.memory_space<vmem>>, vector<1x128xf32>,
    } else {
    }
    %c0 = arith.constant 0 : index
    %c0_1 = arith.constant 0 : index
    %c0_2 = arith.constant 0 : index
    %3 = vector.load %arg2[%c0, %c0_1, %c0_2] : memref<1x1x384xf32, #tpu.memory_space<vmem>>, vector<1x1x384xf32>
    %4 = vector.shape_cast %3 : vector<1x1x384xf32> to vector<1x384xf32>
    %c0_3 = arith.constant 0 : index
    %c0_4 = arith.constant 0 : index
    %5 = vector.load %arg7[%c0_3, %c0_4] : memref<1x128xf32, #tpu.memory_space<vmem>>, vector<1x128xf32>
    %c0_5 = arith.constant 0 : index
    %c0_6 = arith.constant 0 : index
    %6 = vector.load %arg4[%c0_5, %c0_6] : memref<128x384xf32, #tpu.memory_space<vmem>>, vector<128x384xf32>
    %cst = arith.constant dense<0.000000e+00> : vector<1x384xf32>
    %7 = tpu.matmul %5, %6, %cst {dimension_numbers = #tpu.dot_dimension_numbers<[1], [0], [0], [1], [0, 0, 1, 1], [], []>} : vector<1x128xf32>, vector<128x384xf32>, vector<1x384xf32> -> vector<1x384xf32>
    %8 = vector.extract_strided_slice %4 {offsets = [0, 0], sizes = [1, 128], strides = [1, 1]} : vector<1x384xf32> to vector<1x128xf32>
    %9 = vector.extract_strided_slice %7 {offsets = [0, 0], sizes = [1, 128], strides = [1, 1]} : vector<1x384xf32> to vector<1x128xf32>
    %10 = arith.addf %8, %9 : vector<1x128xf32>
    %11 = arith.negf %10 : vector<1x128xf32>
    %12 = math.exp %11 : vector<1x128xf32>
    %cst_7 = arith.constant 1.000000e+00 : f32
    %13 = vector.broadcast %cst_7 : f32 to vector<1x128xf32>
    %14 = arith.addf %13, %12 : vector<1x128xf32>
    %15 = arith.divf %13, %14 : vector<1x128xf32>
    %16 = vector.extract_strided_slice %4 {offsets = [0, 128], sizes = [1, 128], strides = [1, 1]} : vector<1x384xf32> to vector<1x128xf32>
    %17 = vector.extract_strided_slice %7 {offsets = [0, 128], sizes = [1, 128], strides = [1, 1]} : vector<1x384xf32> to vector<1x128xf32>
    %18 = arith.addf %16, %17 : vector<1x128xf32>
    %19 = arith.negf %18 : vector<1x128xf32>
    %20 = math.exp %19 : vector<1x128xf32>
    %cst_8 = arith.constant 1.000000e+00 : f32
    %21 = vector.broadcast %cst_8 : f32 to vector<1x128xf32>
    %22 = arith.addf %21, %20 : vector<1x128xf32>
    %23 = arith.divf %21, %22 : vector<1x128xf32>
    %24 = vector.extract_strided_slice %4 {offsets = [0, 256], sizes = [1, 128], strides = [1, 1]} : vector<1x384xf32> to vector<1x128xf32>
    %25 = vector.extract_strided_slice %7 {offsets = [0, 256], sizes = [1, 128], strides = [1, 1]} : vector<1x384xf32> to vector<1x128xf32>
    %c0_9 = arith.constant 0 : index
    %c0_10 = arith.constant 0 : index
    %26 = vector.load %arg5[%c0_9, %c0_10] : memref<1x128xf32, #tpu.memory_space<vmem>>, vector<1x128xf32>
    %27 = arith.addf %25, %26 : vector<1x128xf32>
    %28 = arith.mulf %15, %27 : vector<1x128xf32>
    %29 = arith.addf %24, %28 : vector<1x128xf32>
    %30 = math.tanh %29 : vector<1x128xf32>
    %cst_11 = arith.constant 1.000000e+00 : f32
    %31 = vector.broadcast %cst_11 : f32 to vector<1x128xf32>
    %32 = arith.subf %31, %23 : vector<1x128xf32>
    %33 = arith.mulf %32, %30 : vector<1x128xf32>
    %34 = arith.mulf %23, %5 : vector<1x128xf32>
    %35 = arith.addf %33, %34 : vector<1x128xf32>
    %c0_12 = arith.constant 0 : index
    %c0_13 = arith.constant 0 : index
    %36 = vector.load %arg7[%c0_12, %c0_13] : memref<1x128xf32, #tpu.memory_space<vmem>>, vector<1x128xf32>
    tpu.vector_store %arg7[%c0_12, %c0_13], %35 {strides = array<i32>} : memref<1x128xf32, #tpu.memory_space<vmem>>, vector<1x128xf32>,
    %c0_14 = arith.constant 0 : index
    %c0_15 = arith.constant 0 : index
    %c0_16 = arith.constant 0 : index
    %37 = vector.load %arg6[%c0_14, %c0_15, %c0_16] : memref<1x1x128xf32, #tpu.memory_space<vmem>>, vector<1x1x128xf32>
    %38 = vector.shape_cast %37 : vector<1x1x128xf32> to vector<1x128xf32>
    %39 = vector.shape_cast %35 : vector<1x128xf32> to vector<1x1x128xf32>
    tpu.vector_store %arg6[%c0_14, %c0_15, %c0_16], %39 {strides = array<i32>} : memref<1x1x128xf32, #tpu.memory_space<vmem>>, vector<1x1x128xf32>,
    return
  }
  func.func @transform_0(%arg0: i32, %arg1: memref<1xi32, #tpu.memory_space<smem>>) -> (i32, i32, i32) {
    %0 = arith.index_cast %arg0 : i32 to index
    %1 = memref.load %arg1[%0] : memref<1xi32, #tpu.memory_space<smem>>
    %c0_i32 = arith.constant 0 : i32
    %c0_i32_0 = arith.constant 0 : i32
    %c0_i32_1 = arith.constant 0 : i32
    return %1, %c0_i32, %c0_i32_0 : i32, i32, i32
  }
  func.func @transform_1(%arg0: i32, %arg1: memref<1xi32, #tpu.memory_space<smem>>) -> (i32, i32) {
    %c0_i32 = arith.constant 0 : i32
    %c0_i32_0 = arith.constant 0 : i32
    %c0_i32_1 = arith.constant 0 : i32
    return %c0_i32, %c0_i32_0 : i32, i32
  }
  func.func @transform_2(%arg0: i32, %arg1: memref<1xi32, #tpu.memory_space<smem>>) -> (i32, i32) {
    %c0_i32 = arith.constant 0 : i32
    %c0_i32_0 = arith.constant 0 : i32
    %c0_i32_1 = arith.constant 0 : i32
    return %c0_i32, %c0_i32_0 : i32, i32
  }
  func.func @transform_3(%arg0: i32, %arg1: memref<1xi32, #tpu.memory_space<smem>>) -> (i32, i32) {
    %c0_i32 = arith.constant 0 : i32
    %c0_i32_0 = arith.constant 0 : i32
    %c0_i32_1 = arith.constant 0 : i32
    return %c0_i32, %c0_i32_0 : i32, i32
  }
  func.func @transform_4(%arg0: i32, %arg1: memref<1xi32, #tpu.memory_space<smem>>) -> (i32, i32, i32) {
    %c0_i32 = arith.constant 0 : i32
    %c0_i32_0 = arith.constant 0 : i32
    %c0_i32_1 = arith.constant 0 : i32
    return %arg0, %c0_i32, %c0_i32_0 : i32, i32, i32
  }
}

</mosaic_0001>

<llo_original>
// kernel: tpu_custom_call.1
$region0: #{tpu_custom_call.1}
  #allocation0 [shape = 'u32[]', space=smem, size = 0x4, offset = 0x4, fixed_abs, tag = 'smem constant byte address 0x4 - core index']
  #allocation1 [shape = 'u32[144,128]{1,0:T(1,128)}', space=vmem, size = 0x12000, scoped, tag = 'internal scratch']
  #allocation2 [shape = 'f32[1,128]{1,0:T(1,128)}', space=vmem, size = 0x200, scoped, tag = 'scratch operand']
  #allocation3 [shape = 's32[1]{0}', space=sflag, size = 0x4, scoped, tag = 'scoped memory for tpu_custom_call.1']
  #allocation4 [shape = 's32[1]{0:T(128)S(6)}', space=smem, size = 0x200, scoped, tag = 'prefetched SMEM operand 0']
  %s0 = inlined_call_operand.<no memory space> [shape: s32[1], index: 0, kind: input, shape index: {}]
  %s1 = inlined_call_operand.hbm [shape: f32[16,1,384], index: 1, kind: input, shape index: {}]
  %s2 = inlined_call_operand.vmem [shape: f32[1,128], index: 2, kind: input, shape index: {}]
  %s3 = inlined_call_operand.hbm [shape: f32[128,384], index: 3, kind: input, shape index: {}]
  %s4 = inlined_call_operand.vmem [shape: f32[1,128], index: 4, kind: input, shape index: {}]
  %s5 = inlined_call_operand.hbm [shape: f32[1,1,128], index: 5, kind: output, shape index: {}]
  %s6 = sld [smem:[#allocation0]]
  $region38: #{tpu_custom_call.1} parent=0
    _
  %s8 = ssub.s32 1, %s6
  %s9 = scalar_select 0, %s8, %s6
  %10 = sst [smem:[#allocation4]] %s0
  $region1: #{tpu_custom_call.1} parent=0
    #allocation5 [shape = 'u8[1536]{0}', space=vmem, size = 0x800, scoped, tag = 'input window, operand 1, single buffered']
    #allocation6 [shape = 's32[1]{0}', space=sflag, size = 0x4, scoped, tag = 'scoped memory for tpu_custom_call.1']
    #allocation7 [shape = 's32[1]{0}', space=sflag, size = 0x4, scoped, tag = 'scoped memory for tpu_custom_call.1']
    #allocation8 [shape = 'u8[196608]{0}', space=vmem, size = 0x30000, scoped, tag = 'input window, operand 3, single buffered']
    #allocation9 [shape = 's32[1]{0}', space=sflag, size = 0x4, scoped, tag = 'scoped memory for tpu_custom_call.1']
    #allocation10 [shape = 'u8[512]{0}', space=vmem, size = 0x400, scoped, tag = 'output window, operand 0, single buffered']
    %11 = vsyncpa [#allocation6], 0
    %12 = vsyncpa [#allocation9], 0
    %13 = vsyncpa [#allocation7], 0
    // Predicated region
    $region2: #{tpu_custom_call.1} parent=1 // pred_check
      _
    $region3: #{tpu_custom_call.1} parent=1 // pred_check_branch
      %15 = sbr.rel (0) target = $region5
    $region4: #{tpu_custom_call.1} parent=1 // pred_region
      %s16 = sld [smem:[#allocation4]]
      %s18 = ssub.s32 48, 48
      %19 = vsyncadd [#allocation6], %s18
      %s20 = smul.addr %s16, 3
      %s21 = smul.addr %s20, 16
      %s22 = scalar_lea.hbm %s1, %s21
      %s24 = sshll.u32 [#allocation5], 4
      %s25 = int_to_ptr.vmem [resolvable:$true] %s24
      %27 = dma.hbm_to_vmem [thread:$0]  %s22, 48, %s25, [#allocation6]
    $region5: #{tpu_custom_call.1} parent=1 // pred_fallthru
      _
    // Predicated region
    $region6: #{tpu_custom_call.1} parent=1 // pred_check
      _
    $region7: #{tpu_custom_call.1} parent=1 // pred_check_branch
      %29 = sbr.rel (0) target = $region9
    $region8: #{tpu_custom_call.1} parent=1 // pred_region
      _
    $region9: #{tpu_custom_call.1} parent=1 // pred_fallthru
      _
    // Predicated region
    $region10: #{tpu_custom_call.1} parent=1 // pred_check
      _
    $region11: #{tpu_custom_call.1} parent=1 // pred_check_branch
      %31 = sbr.rel (0) target = $region13
    $region12: #{tpu_custom_call.1} parent=1 // pred_region
      %s33 = ssub.s32 6144, 6144
      %34 = vsyncadd [#allocation9], %s33
      %s35 = sshll.u32 [#allocation8], 4
      %s36 = int_to_ptr.vmem [resolvable:$true] %s35
      %41 = dma.hbm_to_vmem [thread:$0]  %s3, 6144, %s36, [#allocation9], 384, 384, 24
    $region13: #{tpu_custom_call.1} parent=1 // pred_fallthru
      _
    // Predicated region
    $region14: #{tpu_custom_call.1} parent=1 // pred_check
      _
    $region15: #{tpu_custom_call.1} parent=1 // pred_check_branch
      %43 = sbr.rel (0) target = $region17
    $region16: #{tpu_custom_call.1} parent=1 // pred_region
      _
    $region17: #{tpu_custom_call.1} parent=1 // pred_fallthru
      _
    // Predicated region
    $region18: #{tpu_custom_call.1} parent=1 // pred_check
      _
    $region19: #{tpu_custom_call.1} parent=1 // pred_check_branch
      %45 = sbr.rel (0) target = $region21
    $region20: #{tpu_custom_call.1} parent=1 // pred_region
      %46 = dma.done [#allocation6], 48
    $region21: #{tpu_custom_call.1} parent=1 // pred_fallthru
      _
    // Predicated region
    $region22: #{tpu_custom_call.1} parent=1 // pred_check
      _
    $region23: #{tpu_custom_call.1} parent=1 // pred_check_branch
      %48 = sbr.rel (0) target = $region25
    $region24: #{tpu_custom_call.1} parent=1 // pred_region
      %49 = dma.done [#allocation9], 6144
    $region25: #{tpu_custom_call.1} parent=1 // pred_fallthru
      _
    %s50 = sld [smem:[#allocation4]]
    %p51 = scmp.eq.s32.totalorder 0, 0
    // Predicated region
    $region26: #{tpu_custom_call.1} parent=1 // pred_check
      %p52 = pneg %p51
    $region27: #{tpu_custom_call.1} parent=1 // pred_check_branch
      %54 = sbr.rel (%p52) target = $region29
    $region28: #{tpu_custom_call.1} parent=1 // pred_region
      %v55 = vld [vmem:[%s2] sm:$0x1]
      %56 = vst [vmem:[#allocation2] sm:$0x1] %v55
    $region29: #{tpu_custom_call.1} parent=1 // pred_fallthru
      _
    %v57 = vld [vmem:[#allocation5] sm:$0x7]
    %v58 = vld [vmem:[#allocation2] sm:$0x1]
    %v59 = vld [vmem:[#allocation8] sm:$0xff]
    %v60 = vld [vmem:[#allocation8 + $0x8] sm:$0xff]
    %v61 = vld [vmem:[#allocation8 + $0x10] sm:$0xff]
    %v62 = vld [vmem:[#allocation8 + $0x18] sm:$0xff]
    %v63 = vld [vmem:[#allocation8 + $0x20] sm:$0xff]
    %v64 = vld [vmem:[#allocation8 + $0x28] sm:$0xff]
    %v65 = vld [vmem:[#allocation8 + $0x30] sm:$0xff]
    %v66 = vld [vmem:[#allocation8 + $0x38] sm:$0xff]
    %v67 = vld [vmem:[#allocation8 + $0x40] sm:$0xff]
    %v68 = vld [vmem:[#allocation8 + $0x48] sm:$0xff]
    %v69 = vld [vmem:[#allocation8 + $0x50] sm:$0xff]
    %v70 = vld [vmem:[#allocation8 + $0x58] sm:$0xff]
    %v71 = vld [vmem:[#allocation8 + $0x60] sm:$0xff]
    %v72 = vld [vmem:[#allocation8 + $0x68] sm:$0xff]
    %v73 = vld [vmem:[#allocation8 + $0x70] sm:$0xff]
    %v74 = vld [vmem:[#allocation8 + $0x78] sm:$0xff]
    %v75 = vld [vmem:[#allocation8 + $0x80] sm:$0xff]
    %v76 = vld [vmem:[#allocation8 + $0x88] sm:$0xff]
    %v77 = vld [vmem:[#allocation8 + $0x90] sm:$0xff]
    %v78 = vld [vmem:[#allocation8 + $0x98] sm:$0xff]
    %v79 = vld [vmem:[#allocation8 + $0xa0] sm:$0xff]
    %v80 = vld [vmem:[#allocation8 + $0xa8] sm:$0xff]
    %v81 = vld [vmem:[#allocation8 + $0xb0] sm:$0xff]
    %v82 = vld [vmem:[#allocation8 + $0xb8] sm:$0xff]
    %v83 = vld [vmem:[#allocation8 + $0xc0] sm:$0xff]
    %v84 = vld [vmem:[#allocation8 + $0xc8] sm:$0xff]
    %v85 = vld [vmem:[#allocation8 + $0xd0] sm:$0xff]
    %v86 = vld [vmem:[#allocation8 + $0xd8] sm:$0xff]
    %v87 = vld [vmem:[#allocation8 + $0xe0] sm:$0xff]
    %v88 = vld [vmem:[#allocation8 + $0xe8] sm:$0xff]
    %v89 = vld [vmem:[#allocation8 + $0xf0] sm:$0xff]
    %v90 = vld [vmem:[#allocation8 + $0xf8] sm:$0xff]
    %v91 = vld [vmem:[#allocation8 + $0x100] sm:$0xff]
    %v92 = vld [vmem:[#allocation8 + $0x108] sm:$0xff]
    %v93 = vld [vmem:[#allocation8 + $0x110] sm:$0xff]
    %v94 = vld [vmem:[#allocation8 + $0x118] sm:$0xff]
    %v95 = vld [vmem:[#allocation8 + $0x120] sm:$0xff]
    %v96 = vld [vmem:[#allocation8 + $0x128] sm:$0xff]
    %v97 = vld [vmem:[#allocation8 + $0x130] sm:$0xff]
    %v98 = vld [vmem:[#allocation8 + $0x138] sm:$0xff]
    %v99 = vld [vmem:[#allocation8 + $0x140] sm:$0xff]
    %v100 = vld [vmem:[#allocation8 + $0x148] sm:$0xff]
    %v101 = vld [vmem:[#allocation8 + $0x150] sm:$0xff]
    %v102 = vld [vmem:[#allocation8 + $0x158] sm:$0xff]
    %v103 = vld [vmem:[#allocation8 + $0x160] sm:$0xff]
    %v104 = vld [vmem:[#allocation8 + $0x168] sm:$0xff]
    %v105 = vld [vmem:[#allocation8 + $0x170] sm:$0xff]
    %v106 = vld [vmem:[#allocation8 + $0x178] sm:$0xff]
    %107 = vmatprep.subr.mxu0 %v105
    %108 = vmatpush1.msra.mxu0 %v104
    %109 = vmatprep.subr.mxu0 %v102
    %110 = vmatpush1.msra.mxu0 %v101
    %111 = vmatprep.subr.mxu0 %v99
    %112 = vmatpush1.msra.mxu0 %v98
    %113 = vmatprep.subr.mxu0 %v96
    %114 = vmatpush1.msra.mxu0 %v95
    %115 = vmatprep.subr.mxu0 %v93
    %116 = vmatpush1.msra.mxu0 %v92
    %117 = vmatprep.subr.mxu0 %v90
    %118 = vmatpush1.msra.mxu0 %v89
    %119 = vmatprep.subr.mxu0 %v87
    %120 = vmatpush1.msra.mxu0 %v86
    %121 = vmatprep.subr.mxu0 %v84
    %122 = vmatpush1.msra.mxu0 %v83
    %123 = vmatprep.subr.mxu0 %v81
    %124 = vmatpush1.msra.mxu0 %v80
    %125 = vmatprep.subr.mxu0 %v78
    %126 = vmatpush1.msra.mxu0 %v77
    %127 = vmatprep.subr.mxu0 %v75
    %128 = vmatpush1.msra.mxu0 %v74
    %129 = vmatprep.subr.mxu0 %v72
    %130 = vmatpush1.msra.mxu0 %v71
    %131 = vmatprep.subr.mxu0 %v69
    %132 = vmatpush1.msra.mxu0 %v68
    %133 = vmatprep.subr.mxu0 %v66
    %134 = vmatpush1.msra.mxu0 %v65
    %135 = vmatprep.subr.mxu0 %v63
    %136 = vmatpush1.msra.mxu0 %v62
    %137 = vmatprep.subr.mxu0 %v60
    %138 = vmatpush1.msra.mxu0 %v59
    %139 = vmatprep.subr.mxu0 0.0
    %140 = vmatpush2.msra.mxu0 0.0
    %141 = vmatprep.subr.mxu0 0.0
    %142 = vmatpush2.msra.mxu0 0.0
    %143 = vmatprep.subr.mxu0 0.0
    %144 = vmatpush2.msra.mxu0 0.0
    %145 = vmatprep.subr.mxu0 0.0
    %146 = vmatpush2.msra.mxu0 0.0
    %147 = vmatprep.subr.mxu0 0.0
    %148 = vmatpush2.msra.mxu0 0.0
    %149 = vmatprep.subr.mxu0 0.0
    %150 = vmatpush2.msra.mxu0 0.0
    %151 = vmatprep.subr.mxu0 0.0
    %152 = vmatpush2.msra.mxu0 0.0
    %153 = vmatprep.subr.mxu0 0.0
    %154 = vmatpush2.msra.mxu0 0.0
    %155 = vmatprep.subr.mxu0 0.0
    %156 = vmatpush2.msra.mxu0 0.0
    %157 = vmatprep.subr.mxu0 0.0
    %158 = vmatpush2.msra.mxu0 0.0
    %159 = vmatprep.subr.mxu0 0.0
    %160 = vmatpush2.msra.mxu0 0.0
    %161 = vmatprep.subr.mxu0 0.0
    %162 = vmatpush2.msra.mxu0 0.0
    %163 = vmatprep.subr.mxu0 0.0
    %164 = vmatpush2.msra.mxu0 0.0
    %165 = vmatprep.subr.mxu0 0.0
    %166 = vmatpush2.msra.mxu0 0.0
    %167 = vmatprep.subr.mxu0 0.0
    %168 = vmatpush2.msra.mxu0 0.0
    %169 = vmatprep.subr.mxu0 0.0
    %170 = vmatpush2.msra.mxu0 0.0
    %171 = vmatprep.mubr.f32.mxu0 0.0
    %172 = vmatmul.mubr.f32.gmra.mxu0 %v58
    %v173 = vpop.f32.mrf.mxu0
    %v174 = vadd.f32 0.0, %v173
    %v175 = vpop.f32.mrf.mxu0
    %v176 = vadd.f32 0.0, %v175
    %177 = vdwg.mxu0
    %178 = vmatprep.subr.mxu0 0.0
    %179 = vmatpush1.msra.mxu0 %v106
    %180 = vmatprep.subr.mxu0 0.0
    %181 = vmatpush1.msra.mxu0 %v103
    %182 = vmatprep.subr.mxu0 0.0
    %183 = vmatpush1.msra.mxu0 %v100
    %184 = vmatprep.subr.mxu0 0.0
    %185 = vmatpush1.msra.mxu0 %v97
    %186 = vmatprep.subr.mxu0 0.0
    %187 = vmatpush1.msra.mxu0 %v94
    %188 = vmatprep.subr.mxu0 0.0
    %189 = vmatpush1.msra.mxu0 %v91
    %190 = vmatprep.subr.mxu0 0.0
    %191 = vmatpush1.msra.mxu0 %v88
    %192 = vmatprep.subr.mxu0 0.0
    %193 = vmatpush1.msra.mxu0 %v85
    %194 = vmatprep.subr.mxu0 0.0
    %195 = vmatpush1.msra.mxu0 %v82
    %196 = vmatprep.subr.mxu0 0.0
    %197 = vmatpush1.msra.mxu0 %v79
    %198 = vmatprep.subr.mxu0 0.0
    %199 = vmatpush1.msra.mxu0 %v76
    %200 = vmatprep.subr.mxu0 0.0
    %201 = vmatpush1.msra.mxu0 %v73
    %202 = vmatprep.subr.mxu0 0.0
    %203 = vmatpush1.msra.mxu0 %v70
    %204 = vmatprep.subr.mxu0 0.0
    %205 = vmatpush1.msra.mxu0 %v67
    %206 = vmatprep.subr.mxu0 0.0
    %207 = vmatpush1.msra.mxu0 %v64
    %208 = vmatprep.subr.mxu0 0.0
    %209 = vmatpush1.msra.mxu0 %v61
    %210 = vmatprep.subr.mxu0 0.0
    %211 = vmatpush2.msra.mxu0 0.0
    %212 = vmatprep.subr.mxu0 0.0
    %213 = vmatpush2.msra.mxu0 0.0
    %214 = vmatprep.subr.mxu0 0.0
    %215 = vmatpush2.msra.mxu0 0.0
    %216 = vmatprep.subr.mxu0 0.0
    %217 = vmatpush2.msra.mxu0 0.0
    %218 = vmatprep.subr.mxu0 0.0
    %219 = vmatpush2.msra.mxu0 0.0
    %220 = vmatprep.subr.mxu0 0.0
    %221 = vmatpush2.msra.mxu0 0.0
    %222 = vmatprep.subr.mxu0 0.0
    %223 = vmatpush2.msra.mxu0 0.0
    %224 = vmatprep.subr.mxu0 0.0
    %225 = vmatpush2.msra.mxu0 0.0
    %226 = vmatprep.subr.mxu0 0.0
    %227 = vmatpush2.msra.mxu0 0.0
    %228 = vmatprep.subr.mxu0 0.0
    %229 = vmatpush2.msra.mxu0 0.0
    %230 = vmatprep.subr.mxu0 0.0
    %231 = vmatpush2.msra.mxu0 0.0
    %232 = vmatprep.subr.mxu0 0.0
    %233 = vmatpush2.msra.mxu0 0.0
    %234 = vmatprep.subr.mxu0 0.0
    %235 = vmatpush2.msra.mxu0 0.0
    %236 = vmatprep.subr.mxu0 0.0
    %237 = vmatpush2.msra.mxu0 0.0
    %238 = vmatprep.subr.mxu0 0.0
    %239 = vmatpush2.msra.mxu0 0.0
    %240 = vmatprep.subr.mxu0 0.0
    %241 = vmatpush2.msra.mxu0 0.0
    %242 = vmatprep.mubr.f32.mxu0 0.0
    %243 = vmatmul.mubr.f32.gmra.mxu0 %v58
    %v244 = vpop.f32.mrf.mxu0
    %v245 = vadd.f32 0.0, %v244
    %v246 = vpop.f32.mrf.mxu0
    %247 = vdwg.mxu0
    %v248 = vadd.f32 %v57, %v174
    %v249 = vxor.u32 %v248, 2147483648
    %v250 = vmul.f32 %v249, 1.442695
    %v251 = vpow.pop %v250
    %v252 = vadd.f32 %v251, 1.0
    %v253 = vrcp.pop %v252
    %v254 = vmul.f32 1.0, %v253
    %v256 = vrot.slane %v57, 1
    %v258 = vadd.f32 %v256, %v176
    %v259 = vxor.u32 %v258, 2147483648
    %v260 = vmul.f32 %v259, 1.442695
    %v261 = vpow.pop %v260
    %v262 = vadd.f32 %v261, 1.0
    %v263 = vrcp.pop %v262
    %v264 = vmul.f32 1.0, %v263
    %v265 = vld [vmem:[%s4] sm:$0x1]
    %v266 = vadd.f32 %v245, %v265
    %v267 = vmul.f32 %v254, %v266
    %v268 = vrot.slane %v57, 2
    %v270 = vadd.f32 %v268, %v267
    %v271 = vtanh.pop %v270
    %v272 = vsub.f32 1.0, %v264
    %v273 = vmul.f32 %v272, %v271
    %v274 = vmul.f32 %v264, %v58
    %v275 = vadd.f32 %v273, %v274
    %276 = vst [vmem:[#allocation2] sm:$0x1] %v275
    %277 = vst [vmem:[#allocation10] sm:$0x1] %v275
    // Predicated region
    $region30: #{tpu_custom_call.1} parent=1 // pred_check
      _
    $region31: #{tpu_custom_call.1} parent=1 // pred_check_branch
      %279 = sbr.rel (0) target = $region33
    $region32: #{tpu_custom_call.1} parent=1 // pred_region
      %s281 = ssub.s32 16, 16
      %282 = vsyncadd [#allocation7], %s281
      %s284 = sshll.u32 [#allocation10], 4
      %s285 = int_to_ptr.vmem [resolvable:$true] %s284
      %287 = dma.vmem_to_hbm [thread:$0]  %s285, 16, %s5, [#allocation7]
    $region33: #{tpu_custom_call.1} parent=1 // pred_fallthru
      _
    // Predicated region
    $region34: #{tpu_custom_call.1} parent=1 // pred_check
      _
    $region35: #{tpu_custom_call.1} parent=1 // pred_check_branch
      %289 = sbr.rel (0) target = $region37
    $region36: #{tpu_custom_call.1} parent=1 // pred_region
      %290 = dma.done [#allocation7], 16
    $region37: #{tpu_custom_call.1} parent=1 // pred_fallthru
      _
    %291 = vsyncpa [#allocation6], 1
    %292 = vsyncpa [#allocation9], 1
    %293 = vsyncpa [#allocation7], 1

</llo_original>
